<compile_context>
chip_gen: v6e
topology: v6e:2x2x1
jax: 0.10.0
libtpu: 0.0.40
codegen_flags: <defaults>
</compile_context>

<pallas_src>
import jax
import jax.numpy as jnp
from jax.experimental import pallas as pl
from jax.experimental.pallas import tpu as pltpu


def _round_up(x, m):
    return ((x + m - 1) // m) * m


def _block_diag(w, pack):
    """(in, out) weight -> (pack*in, pack*out) block-diagonal weight."""
    if pack == 1:
        return w
    din, dout = w.shape
    eye = jnp.eye(pack, dtype=w.dtype)
    bd = jnp.einsum("pq,io->piqo", eye, w)
    return bd.reshape(pack * din, pack * dout)


def fixed_kernel(z_ref, w1_ref, b1_ref, w2_ref, b2_ref, o_ref):
    # Optional f32->bf16 cast of the streamed z tile (VPU, hidden under DMA).
    a = z_ref[...].astype(w1_ref.dtype)
    # Layer 1 on the MXU; bias + ReLU epilogue in f32 on the VPU.
    h = jnp.dot(a, w1_ref[...], preferred_element_type=jnp.float32)
    h = jnp.maximum(h + b1_ref[...], 0.0)
    # Layer 2 (activations cast back to the weights' matmul dtype).
    y = jnp.dot(h.astype(w2_ref.dtype), w2_ref[...],
                preferred_element_type=jnp.float32) + b2_ref[...]
    # sigmoid(y) = 0.5 * tanh(0.5*y) + 0.5 : one EUP push, exact.
    o_ref[...] = 0.5 * jnp.tanh(0.5 * y) + 0.5


def prepare_fixed_params(w1, b1, w2, b2, *, use_bf16=True):
    """One-time parameter prep.

    w1: (z_size, h_size), b1: (h_size,)   -- (in, out) layout
    w2: (h_size, x_size), b2: (x_size,)
    """
    w1 = jnp.asarray(w1, jnp.float32)
    w2 = jnp.asarray(w2, jnp.float32)
    b1 = jnp.reshape(jnp.asarray(b1, jnp.float32), (1, -1))
    b2 = jnp.reshape(jnp.asarray(b2, jnp.float32), (1, -1))
    z_size, h_size = w1.shape
    x_size = w2.shape[1]

    # Fold z*2 - 1 into layer 1: (2z-1)@W1 + b1 = z@(2W1) + (b1 - 1@W1).
    b1 = b1 - jnp.sum(w1, axis=0, keepdims=True)
    w1 = 2.0 * w1

    # Row-packing factor so that pack * x_size == 128 (lane-dense, no pad).
    if x_size % 128 == 0:
        pack = 1
    elif 128 % x_size == 0 and (128 // x_size) * max(z_size, h_size) <= 4096:
        pack = 128 // x_size
    else:
        pack = 1  # generic fallback: pad output columns instead

    w1p = _block_diag(w1, pack)
    w2p = _block_diag(w2, pack)
    b1p = jnp.tile(b1, (1, pack))
    b2p = jnp.tile(b2, (1, pack))

    out_cols = pack * x_size
    if out_cols % 128 != 0:
        # Fallback only: pad output columns to a lane-dense multiple of 128.
        xp = _round_up(max(out_cols, 128), 128)
        w2p = jnp.pad(w2p, ((0, 0), (0, xp - out_cols)))
        b2p = jnp.pad(b2p, ((0, 0), (0, xp - out_cols)))
        out_cols = xp

    mm_dtype = jnp.bfloat16 if use_bf16 else jnp.float32
    return {
        "w1": w1p.astype(mm_dtype), "b1": b1p,
        "w2": w2p.astype(mm_dtype), "b2": b2p,
        "pack": pack, "x_size": x_size, "z_size": z_size,
    }


def fixed_forward(z, params, *, block_b=8192, min_steps=1):
    """z: (B, z_size) float -> (B, x_size) float32.

    block_b: max packed rows per grid step (default 8192; ~20 MiB VMEM).
    min_steps: set to >= 8 on v7x for large batches so the "parallel" grid
               axis load-balances across both TensorCores.
    """
    w1, b1, w2, b2 = params["w1"], params["b1"], params["w2"], params["b2"]
    pack, x_size = params["pack"], params["x_size"]
    B, z_size = z.shape
    assert z_size == params["z_size"]

    # Rare ragged-batch fallback: pad rows up to a multiple of `pack`.
    B_eff = B
    if B % pack != 0:
        B_eff = _round_up(B, pack)
        z = jnp.pad(z, ((0, B_eff - B), (0, 0)))

    R = B_eff // pack                 # packed rows
    zin_cols = pack * z_size
    out_cols = w2.shape[1]
    zz = z.reshape(R, zin_cols) if pack > 1 else z   # free row-major reshape

    # Batch tiling: balance tile sizes across grid steps; masked partial tiles.
    tb_max = max(16, block_b - block_b % 16)
    steps = max(1, min_steps, pl.cdiv(R, tb_max))
    steps = max(1, min(steps, pl.cdiv(R, 16)))       # keep tiles >= 16 rows
    TB = _round_up(pl.cdiv(R, steps), 16)
    grid = pl.cdiv(R, TB)

    # Advisory cost + VMEM budget (tiles are lane-padded to 128 in VMEM).
    w_bytes = sum(int(a.size) * a.dtype.itemsize for a in (w1, b1, w2, b2))
    cost = pl.CostEstimate(
        flops=2 * R * (zin_cols * w1.shape[1] + w1.shape[1] * out_cols),
        transcendentals=R * out_cols,
        bytes_accessed=int(zz.size) * zz.dtype.itemsize + R * out_cols * 4 + w_bytes,
    )
    z_tile_bytes = TB * _round_up(zin_cols, 128) * zz.dtype.itemsize
    o_tile_bytes = TB * _round_up(out_cols, 128) * 4
    vmem_need = 2 * (z_tile_bytes + o_tile_bytes) + 4 * w_bytes + (2 << 20)
    vmem_limit = int(min(max(vmem_need, 32 << 20), 64 << 20))

    out = pl.pallas_call(
        fixed_kernel,
        out_shape=jax.ShapeDtypeStruct((R, out_cols), jnp.float32),
        grid_spec=pltpu.PrefetchScalarGridSpec(
            num_scalar_prefetch=0,
            grid=(grid,),
            in_specs=[
                pl.BlockSpec((TB, zin_cols), lambda i: (i, 0)),   # streamed
                pl.BlockSpec(w1.shape, lambda i: (0, 0)),         # resident
                pl.BlockSpec(b1.shape, lambda i: (0, 0)),         # resident
                pl.BlockSpec(w2.shape, lambda i: (0, 0)),         # resident
                pl.BlockSpec(b2.shape, lambda i: (0, 0)),         # resident
            ],
            out_specs=pl.BlockSpec((TB, out_cols), lambda i: (i, 0)),
        ),
        compiler_params=pltpu.CompilerParams(
            dimension_semantics=("parallel",),        # megacore sharding on v7x
            vmem_limit_bytes=vmem_limit,
        ),
        cost_estimate=cost,
    )(zz, w1, b1, w2, b2)

    if pack > 1:
        out = out.reshape(B_eff, x_size)              # free row-major reshape
    elif out_cols != x_size:
        out = out[:, :x_size]                         # fallback path only
    if B_eff != B:
        out = out[:B]                                 # ragged-batch fallback only
    return out


def reference_forward(z, w1, b1, w2, b2):
    zz = z * 2.0 - 1.0
    h = jnp.maximum(zz @ w1 + b1.reshape(1, -1), 0.0)
    return jax.nn.sigmoid(h @ w2 + b2.reshape(1, -1))


if __name__ == "__main__":
    # Small shapes consistent with Fixed(x_size, h_size, z_size, layers=2).
    B, z_size, h_size, x_size = 2, 16, 32, 64

    key = jax.random.PRNGKey(0)
    k_z, k_w1, k_b1, k_w2, k_b2 = jax.random.split(key, 5)

    z = jax.random.uniform(k_z, (B, z_size), dtype=jnp.float32)

    # Deterministic synthetic params (PyTorch-style fan-in bound), (in,out) layout.
    bound1 = 1.0 / (z_size ** 0.5)
    bound2 = 1.0 / (h_size ** 0.5)
    w1 = jax.random.uniform(k_w1, (z_size, h_size), jnp.float32, -bound1, bound1)
    b1 = jax.random.uniform(k_b1, (h_size,), jnp.float32, -bound1, bound1)
    w2 = jax.random.uniform(k_w2, (h_size, x_size), jnp.float32, -bound2, bound2)
    b2 = jax.random.uniform(k_b2, (x_size,), jnp.float32, -bound2, bound2)

    ref = reference_forward(z, w1, b1, w2, b2)

    # f32-MXU path (tight tolerance; exact tanh-based sigmoid).
    p32 = prepare_fixed_params(w1, b1, w2, b2, use_bf16=False)
    out32 = jax.block_until_ready(fixed_forward(z, p32))
    assert out32.shape == (B, x_size)
    assert jnp.allclose(out32, ref, atol=5e-3, rtol=5e-3)

    # bf16-MXU path (v6e/v7x recommendation), looser tolerance.
    pbf = prepare_fixed_params(w1, b1, w2, b2, use_bf16=True)
    outbf = jax.block_until_ready(fixed_forward(z, pbf))
    assert outbf.shape == (B, x_size)
    assert jnp.allclose(outbf, ref, atol=2e-2, rtol=2e-2)

    # Multi-tile grid with a masked partial last tile (B=300 -> 150 packed rows,
    # tile 64 -> grid=3, last tile 22/64 rows valid).
    zb = jax.random.uniform(jax.random.PRNGKey(1), (300, z_size), dtype=jnp.float32)
    refb = reference_forward(zb, w1, b1, w2, b2)
    outb = jax.block_until_ready(fixed_forward(zb, p32, block_b=64))
    assert outb.shape == (300, x_size)
    assert jnp.allclose(outb, refb, atol=5e-3, rtol=5e-3)

    # Generic fallback path (x_size=100 not a divisor of 128 -> pack=1,
    # padded output columns + column slice; odd B exercises masked rows).
    x2 = 100
    k_w2b, k_b2b = jax.random.split(jax.random.PRNGKey(2))
    w2b = jax.random.uniform(k_w2b, (h_size, x2), jnp.float32, -bound2, bound2)
    b2b = jax.random.uniform(k_b2b, (x2,), jnp.float32, -bound2, bound2)
    zc = jax.random.uniform(jax.random.PRNGKey(3), (5, z_size), dtype=jnp.float32)
    refc = reference_forward(zc, w1, b1, w2b, b2b)
    pfb = prepare_fixed_params(w1, b1, w2b, b2b, use_bf16=False)
    outc = jax.block_until_ready(fixed_forward(zc, pfb))
    assert outc.shape == (5, x2)
    assert jnp.allclose(outc, refc, atol=5e-3, rtol=5e-3)

    # TODO(synk): Decoder layers=1 (Tanh) and layers=3 (ConvTranspose2d stack)
    # branches are unused by Fixed's default (layers=2) and are not implemented.
    print("KERNEL_OK")
</pallas_src>

<mosaic_0001>
module attributes {stable_mosaic.version = 11 : i64} {
  func.func @fixed_kernel(%arg0: i32, %arg1: memref<16x32xf32, #tpu.memory_space<vmem>>, %arg2: memref<32x64xf32, #tpu.memory_space<vmem>>, %arg3: memref<1x64xf32, #tpu.memory_space<vmem>>, %arg4: memref<64x128xf32, #tpu.memory_space<vmem>>, %arg5: memref<1x128xf32, #tpu.memory_space<vmem>>, %arg6: memref<16x128xf32, #tpu.memory_space<vmem>>) attributes {dimension_semantics = [#tpu.dimension_semantics<parallel>], iteration_bounds = array<i64: 1>, scalar_prefetch = 0 : i64, scratch_operands = 0 : i64, tpu.core_type = #tpu.core_type<tc>, window_params = [{transform_indices = @transform_0, window_bounds = array<i64: 16, 32>}, {pipeline_mode = #tpu.pipeline_mode<synchronous>, transform_indices = @transform_1, window_bounds = array<i64: 32, 64>}, {pipeline_mode = #tpu.pipeline_mode<synchronous>, transform_indices = @transform_2, window_bounds = array<i64: 1, 64>}, {pipeline_mode = #tpu.pipeline_mode<synchronous>, transform_indices = @transform_3, window_bounds = array<i64: 64, 128>}, {pipeline_mode = #tpu.pipeline_mode<synchronous>, transform_indices = @transform_4, window_bounds = array<i64: 1, 128>}, {transform_indices = @transform_5, window_bounds = array<i64: 16, 128>}]} {
    %c0 = arith.constant 0 : index
    %c0_0 = arith.constant 0 : index
    %0 = vector.load %arg1[%c0, %c0_0] : memref<16x32xf32, #tpu.memory_space<vmem>>, vector<16x32xf32>
    %c0_1 = arith.constant 0 : index
    %c0_2 = arith.constant 0 : index
    %1 = vector.load %arg2[%c0_1, %c0_2] : memref<32x64xf32, #tpu.memory_space<vmem>>, vector<32x64xf32>
    %cst = arith.constant dense<0.000000e+00> : vector<16x64xf32>
    %2 = tpu.matmul %0, %1, %cst {dimension_numbers = #tpu.dot_dimension_numbers<[1], [0], [0], [1], [0, 0, 1, 1], [], []>} : vector<16x32xf32>, vector<32x64xf32>, vector<16x64xf32> -> vector<16x64xf32>
    %c0_3 = arith.constant 0 : index
    %c0_4 = arith.constant 0 : index
    %3 = vector.load %arg3[%c0_3, %c0_4] : memref<1x64xf32, #tpu.memory_space<vmem>>, vector<1x64xf32>
    %4 = vector.broadcast %3 : vector<1x64xf32> to vector<16x64xf32>
    %5 = arith.addf %2, %4 : vector<16x64xf32>
    %cst_5 = arith.constant 0.000000e+00 : f32
    %6 = vector.broadcast %cst_5 : f32 to vector<16x64xf32>
    %7 = arith.maximumf %5, %6 : vector<16x64xf32>
    %c0_6 = arith.constant 0 : index
    %c0_7 = arith.constant 0 : index
    %8 = vector.load %arg4[%c0_6, %c0_7] : memref<64x128xf32, #tpu.memory_space<vmem>>, vector<64x128xf32>
    %cst_8 = arith.constant dense<0.000000e+00> : vector<16x128xf32>
    %9 = tpu.matmul %7, %8, %cst_8 {dimension_numbers = #tpu.dot_dimension_numbers<[1], [0], [0], [1], [0, 0, 1, 1], [], []>} : vector<16x64xf32>, vector<64x128xf32>, vector<16x128xf32> -> vector<16x128xf32>
    %c0_9 = arith.constant 0 : index
    %c0_10 = arith.constant 0 : index
    %10 = vector.load %arg5[%c0_9, %c0_10] : memref<1x128xf32, #tpu.memory_space<vmem>>, vector<1x128xf32>
    %11 = vector.broadcast %10 : vector<1x128xf32> to vector<16x128xf32>
    %12 = arith.addf %9, %11 : vector<16x128xf32>
    %cst_11 = arith.constant 5.000000e-01 : f32
    %13 = vector.broadcast %cst_11 : f32 to vector<16x128xf32>
    %14 = arith.mulf %13, %12 : vector<16x128xf32>
    %15 = math.tanh %14 : vector<16x128xf32>
    %cst_12 = arith.constant 5.000000e-01 : f32
    %16 = vector.broadcast %cst_12 : f32 to vector<16x128xf32>
    %17 = arith.mulf %16, %15 : vector<16x128xf32>
    %cst_13 = arith.constant 5.000000e-01 : f32
    %18 = vector.broadcast %cst_13 : f32 to vector<16x128xf32>
    %19 = arith.addf %17, %18 : vector<16x128xf32>
    %c0_14 = arith.constant 0 : index
    %c0_15 = arith.constant 0 : index
    %20 = vector.load %arg6[%c0_14, %c0_15] : memref<16x128xf32, #tpu.memory_space<vmem>>, vector<16x128xf32>
    tpu.vector_store %arg6[%c0_14, %c0_15], %19 {strides = array<i32>} : memref<16x128xf32, #tpu.memory_space<vmem>>, vector<16x128xf32>,
    return
  }
  func.func @transform_0(%arg0: i32) -> (i32, i32) {
    %c0_i32 = arith.constant 0 : i32
    %c0_i32_0 = arith.constant 0 : i32
    return %arg0, %c0_i32 : i32, i32
  }
  func.func @transform_1(%arg0: i32) -> (i32, i32) {
    %c0_i32 = arith.constant 0 : i32
    %c0_i32_0 = arith.constant 0 : i32
    %c0_i32_1 = arith.constant 0 : i32
    return %c0_i32, %c0_i32_0 : i32, i32
  }
  func.func @transform_2(%arg0: i32) -> (i32, i32) {
    %c0_i32 = arith.constant 0 : i32
    %c0_i32_0 = arith.constant 0 : i32
    %c0_i32_1 = arith.constant 0 : i32
    return %c0_i32, %c0_i32_0 : i32, i32
  }
  func.func @transform_3(%arg0: i32) -> (i32, i32) {
    %c0_i32 = arith.constant 0 : i32
    %c0_i32_0 = arith.constant 0 : i32
    %c0_i32_1 = arith.constant 0 : i32
    return %c0_i32, %c0_i32_0 : i32, i32
  }
  func.func @transform_4(%arg0: i32) -> (i32, i32) {
    %c0_i32 = arith.constant 0 : i32
    %c0_i32_0 = arith.constant 0 : i32
    %c0_i32_1 = arith.constant 0 : i32
    return %c0_i32, %c0_i32_0 : i32, i32
  }
  func.func @transform_5(%arg0: i32) -> (i32, i32) {
    %c0_i32 = arith.constant 0 : i32
    %c0_i32_0 = arith.constant 0 : i32
    return %arg0, %c0_i32 : i32, i32
  }
}

</mosaic_0001>

<llo_original>
// kernel: tpu_custom_call.1
$region0: #{tpu_custom_call.1}
  #allocation0 [shape = 'u32[]', space=smem, size = 0x4, offset = 0x4, fixed_abs, tag = 'smem constant byte address 0x4 - core index']
  #allocation1 [shape = 'u32[144,128]{1,0:T(1,128)}', space=vmem, size = 0x12000, scoped, tag = 'internal scratch']
  %s0 = inlined_call_operand.hbm [shape: f32[1,32], index: 0, kind: input, shape index: {}]
  %s1 = inlined_call_operand.hbm [shape: f32[32,64], index: 1, kind: input, shape index: {}]
  %s2 = inlined_call_operand.vmem [shape: f32[1,64], index: 2, kind: input, shape index: {}]
  %s3 = inlined_call_operand.hbm [shape: f32[64,128], index: 3, kind: input, shape index: {}]
  %s4 = inlined_call_operand.vmem [shape: f32[1,128], index: 4, kind: input, shape index: {}]
  %s5 = inlined_call_operand.hbm [shape: f32[1,128], index: 5, kind: output, shape index: {}]
  %s6 = sld [smem:[#allocation0]]
  $region42: #{tpu_custom_call.1} parent=0
    _
  %s8 = ssub.s32 1, %s6
  %s9 = scalar_select 0, %s8, %s6
  $region1: #{tpu_custom_call.1} parent=0
    #allocation2 [shape = 'u8[8192]{0}', space=vmem, size = 0x2000, scoped, tag = 'input window, operand 0, single buffered']
    #allocation3 [shape = 's32[1]{0}', space=sflag, size = 0x4, scoped, tag = 'scoped memory for tpu_custom_call.1']
    #allocation4 [shape = 's32[1]{0}', space=sflag, size = 0x4, scoped, tag = 'scoped memory for tpu_custom_call.1']
    #allocation5 [shape = 'u8[16384]{0}', space=vmem, size = 0x4000, scoped, tag = 'input window, operand 1, single buffered']
    #allocation6 [shape = 's32[1]{0}', space=sflag, size = 0x4, scoped, tag = 'scoped memory for tpu_custom_call.1']
    #allocation7 [shape = 'u8[32768]{0}', space=vmem, size = 0x8000, scoped, tag = 'input window, operand 3, single buffered']
    #allocation8 [shape = 'u8[8192]{0}', space=vmem, size = 0x2000, scoped, tag = 'output window, operand 0, single buffered']
    %10 = vsyncpa [#allocation3], 0
    %11 = vsyncpa [#allocation6], 0
    %12 = vsyncpa [#allocation4], 0
    // Predicated region
    $region2: #{tpu_custom_call.1} parent=1 // pred_check
      _
    $region3: #{tpu_custom_call.1} parent=1 // pred_check_branch
      %14 = sbr.rel (0) target = $region5
    $region4: #{tpu_custom_call.1} parent=1 // pred_region
      %s16 = ssub.s32 256, 16
      %17 = vsyncadd [#allocation3], %s16
      %s18 = sshll.u32 [#allocation2], 4
      %s19 = int_to_ptr.vmem [resolvable:$true] %s18
      %24 = dma.hbm_to_vmem [thread:$0]  %s0, 16, %s19, [#allocation3], 16, 16, 1
    $region5: #{tpu_custom_call.1} parent=1 // pred_fallthru
      _
    // Predicated region
    $region6: #{tpu_custom_call.1} parent=1 // pred_check
      _
    $region7: #{tpu_custom_call.1} parent=1 // pred_check_branch
      %26 = sbr.rel (0) target = $region9
    $region8: #{tpu_custom_call.1} parent=1 // pred_region
      %s28 = ssub.s32 512, 512
      %29 = vsyncadd [#allocation6], %s28
      %s30 = sshll.u32 [#allocation5], 4
      %s31 = int_to_ptr.vmem [resolvable:$true] %s30
      %36 = dma.hbm_to_vmem [thread:$0]  %s1, 512, %s31, [#allocation6], 128, 128, 8
    $region9: #{tpu_custom_call.1} parent=1 // pred_fallthru
      _
    // Predicated region
    $region10: #{tpu_custom_call.1} parent=1 // pred_check
      _
    $region11: #{tpu_custom_call.1} parent=1 // pred_check_branch
      %38 = sbr.rel (0) target = $region13
    $region12: #{tpu_custom_call.1} parent=1 // pred_region
      _
    $region13: #{tpu_custom_call.1} parent=1 // pred_fallthru
      _
    // Predicated region
    $region14: #{tpu_custom_call.1} parent=1 // pred_check
      _
    $region15: #{tpu_custom_call.1} parent=1 // pred_check_branch
      %40 = sbr.rel (0) target = $region17
    $region16: #{tpu_custom_call.1} parent=1 // pred_region
      %s42 = ssub.s32 1024, 1024
      %43 = vsyncadd [#allocation6], %s42
      %s44 = sshll.u32 [#allocation7], 4
      %s45 = int_to_ptr.vmem [resolvable:$true] %s44
      %50 = dma.hbm_to_vmem [thread:$0]  %s3, 1024, %s45, [#allocation6], 128, 128, 8
    $region17: #{tpu_custom_call.1} parent=1 // pred_fallthru
      _
    // Predicated region
    $region18: #{tpu_custom_call.1} parent=1 // pred_check
      _
    $region19: #{tpu_custom_call.1} parent=1 // pred_check_branch
      %52 = sbr.rel (0) target = $region21
    $region20: #{tpu_custom_call.1} parent=1 // pred_region
      _
    $region21: #{tpu_custom_call.1} parent=1 // pred_fallthru
      _
    // Predicated region
    $region22: #{tpu_custom_call.1} parent=1 // pred_check
      _
    $region23: #{tpu_custom_call.1} parent=1 // pred_check_branch
      %54 = sbr.rel (0) target = $region25
    $region24: #{tpu_custom_call.1} parent=1 // pred_region
      %55 = dma.done [#allocation3], 256
    $region25: #{tpu_custom_call.1} parent=1 // pred_fallthru
      _
    // Predicated region
    $region26: #{tpu_custom_call.1} parent=1 // pred_check
      _
    $region27: #{tpu_custom_call.1} parent=1 // pred_check_branch
      %57 = sbr.rel (0) target = $region29
    $region28: #{tpu_custom_call.1} parent=1 // pred_region
      %58 = dma.done [#allocation6], 512
    $region29: #{tpu_custom_call.1} parent=1 // pred_fallthru
      _
    // Predicated region
    $region30: #{tpu_custom_call.1} parent=1 // pred_check
      _
    $region31: #{tpu_custom_call.1} parent=1 // pred_check_branch
      %60 = sbr.rel (0) target = $region33
    $region32: #{tpu_custom_call.1} parent=1 // pred_region
      %61 = dma.done [#allocation6], 1024
    $region33: #{tpu_custom_call.1} parent=1 // pred_fallthru
      _
    %v62 = vld [vmem:[#allocation2] sm:$0xff]
    %v63 = vld [vmem:[#allocation2 + $0x8] sm:$0xff]
    %v64 = vld [vmem:[#allocation5] sm:$0xff]
    %v65 = vld [vmem:[#allocation5 + $0x8] sm:$0xff]
    %v66 = vld [vmem:[#allocation5 + $0x10] sm:$0xff]
    %v67 = vld [vmem:[#allocation5 + $0x18] sm:$0xff]
    %v68 = vld [vmem:[%s2] sm:$0x1]
    %v70 = vlaneseq
    %v71 = vshrl.u32 %v70, 7
    %v72 = vsub.s32 0, %v71
    %v73 = vrot.slane %v68, %v72
    %vm75 = vcmask 261120
    %v77 = vsel %vm75, %v62, 0
    %v80 = vsel %vm75, %v63, 0
    %82 = vmatprep.subr.mxu0 0.0
    %83 = vmatpush1.msra.mxu0 0.0
    %84 = vmatprep.subr.mxu0 0.0
    %85 = vmatpush1.msra.mxu0 0.0
    %86 = vmatprep.subr.mxu0 0.0
    %87 = vmatpush1.msra.mxu0 0.0
    %88 = vmatprep.subr.mxu0 0.0
    %89 = vmatpush1.msra.mxu0 0.0
    %90 = vmatprep.subr.mxu0 0.0
    %91 = vmatpush1.msra.mxu0 0.0
    %92 = vmatprep.subr.mxu0 0.0
    %93 = vmatpush1.msra.mxu0 0.0
    %94 = vmatprep.subr.mxu0 0.0
    %95 = vmatpush1.msra.mxu0 0.0
    %96 = vmatprep.subr.mxu0 0.0
    %97 = vmatpush1.msra.mxu0 0.0
    %98 = vmatprep.subr.mxu0 0.0
    %99 = vmatpush1.msra.mxu0 0.0
    %100 = vmatprep.subr.mxu0 0.0
    %101 = vmatpush1.msra.mxu0 0.0
    %102 = vmatprep.subr.mxu0 0.0
    %103 = vmatpush1.msra.mxu0 0.0
    %104 = vmatprep.subr.mxu0 0.0
    %105 = vmatpush1.msra.mxu0 0.0
    %106 = vmatprep.subr.mxu0 0.0
    %107 = vmatpush1.msra.mxu0 %v67
    %108 = vmatprep.subr.mxu0 0.0
    %109 = vmatpush1.msra.mxu0 %v66
    %110 = vmatprep.subr.mxu0 0.0
    %111 = vmatpush1.msra.mxu0 %v65
    %112 = vmatprep.subr.mxu0 0.0
    %113 = vmatpush1.msra.mxu0 %v64
    %114 = vmatprep.subr.mxu0 0.0
    %115 = vmatpush2.msra.mxu0 0.0
    %116 = vmatprep.subr.mxu0 0.0
    %117 = vmatpush2.msra.mxu0 0.0
    %118 = vmatprep.subr.mxu0 0.0
    %119 = vmatpush2.msra.mxu0 0.0
    %120 = vmatprep.subr.mxu0 0.0
    %121 = vmatpush2.msra.mxu0 0.0
    %122 = vmatprep.subr.mxu0 0.0
    %123 = vmatpush2.msra.mxu0 0.0
    %124 = vmatprep.subr.mxu0 0.0
    %125 = vmatpush2.msra.mxu0 0.0
    %126 = vmatprep.subr.mxu0 0.0
    %127 = vmatpush2.msra.mxu0 0.0
    %128 = vmatprep.subr.mxu0 0.0
    %129 = vmatpush2.msra.mxu0 0.0
    %130 = vmatprep.subr.mxu0 0.0
    %131 = vmatpush2.msra.mxu0 0.0
    %132 = vmatprep.subr.mxu0 0.0
    %133 = vmatpush2.msra.mxu0 0.0
    %134 = vmatprep.subr.mxu0 0.0
    %135 = vmatpush2.msra.mxu0 0.0
    %136 = vmatprep.subr.mxu0 0.0
    %137 = vmatpush2.msra.mxu0 0.0
    %138 = vmatprep.subr.mxu0 0.0
    %139 = vmatpush2.msra.mxu0 0.0
    %140 = vmatprep.subr.mxu0 0.0
    %141 = vmatpush2.msra.mxu0 0.0
    %142 = vmatprep.subr.mxu0 0.0
    %143 = vmatpush2.msra.mxu0 0.0
    %144 = vmatprep.subr.mxu0 0.0
    %145 = vmatpush2.msra.mxu0 0.0
    %146 = vmatprep.mubr.f32.mxu0 0.0
    %147 = vmatmul.mubr.f32.gmra.mxu0 %v77
    %v148 = vpop.f32.mrf.mxu0
    %v149 = vadd.f32 %v73, %v148
    %v150 = vpop.f32.mrf.mxu0
    %151 = vmatprep.mubr.f32.mxu0 0.0
    %152 = vmatmul.mubr.f32.gmra.mxu0 %v80
    %v153 = vpop.f32.mrf.mxu0
    %v154 = vadd.f32 %v73, %v153
    %v155 = vpop.f32.mrf.mxu0
    %156 = vdwg.mxu0
    %v157 = vmax.f32 %v149, 0.0
    %v158 = vmax.f32 %v154, 0.0
    %v159 = vld [vmem:[#allocation7] sm:$0xff]
    %v160 = vld [vmem:[#allocation7 + $0x8] sm:$0xff]
    %v161 = vld [vmem:[#allocation7 + $0x10] sm:$0xff]
    %v162 = vld [vmem:[#allocation7 + $0x18] sm:$0xff]
    %v163 = vld [vmem:[#allocation7 + $0x20] sm:$0xff]
    %v164 = vld [vmem:[#allocation7 + $0x28] sm:$0xff]
    %v165 = vld [vmem:[#allocation7 + $0x30] sm:$0xff]
    %v166 = vld [vmem:[#allocation7 + $0x38] sm:$0xff]
    %v167 = vld [vmem:[%s4] sm:$0x1]
    %v169 = vlaneseq
    %v170 = vshrl.u32 %v169, 7
    %v171 = vsub.s32 0, %v170
    %v172 = vrot.slane %v167, %v171
    %vm174 = vcmask 523264
    %v176 = vsel %vm174, %v157, 0
    %v179 = vsel %vm174, %v158, 0
    %181 = vmatprep.subr.mxu0 0.0
    %182 = vmatpush1.msra.mxu0 0.0
    %183 = vmatprep.subr.mxu0 0.0
    %184 = vmatpush1.msra.mxu0 0.0
    %185 = vmatprep.subr.mxu0 0.0
    %186 = vmatpush1.msra.mxu0 0.0
    %187 = vmatprep.subr.mxu0 0.0
    %188 = vmatpush1.msra.mxu0 0.0
    %189 = vmatprep.subr.mxu0 0.0
    %190 = vmatpush1.msra.mxu0 0.0
    %191 = vmatprep.subr.mxu0 0.0
    %192 = vmatpush1.msra.mxu0 0.0
    %193 = vmatprep.subr.mxu0 0.0
    %194 = vmatpush1.msra.mxu0 0.0
    %195 = vmatprep.subr.mxu0 0.0
    %196 = vmatpush1.msra.mxu0 0.0
    %197 = vmatprep.subr.mxu0 0.0
    %198 = vmatpush1.msra.mxu0 %v166
    %199 = vmatprep.subr.mxu0 0.0
    %200 = vmatpush1.msra.mxu0 %v165
    %201 = vmatprep.subr.mxu0 0.0
    %202 = vmatpush1.msra.mxu0 %v164
    %203 = vmatprep.subr.mxu0 0.0
    %204 = vmatpush1.msra.mxu0 %v163
    %205 = vmatprep.subr.mxu0 0.0
    %206 = vmatpush1.msra.mxu0 %v162
    %207 = vmatprep.subr.mxu0 0.0
    %208 = vmatpush1.msra.mxu0 %v161
    %209 = vmatprep.subr.mxu0 0.0
    %210 = vmatpush1.msra.mxu0 %v160
    %211 = vmatprep.subr.mxu0 0.0
    %212 = vmatpush1.msra.mxu0 %v159
    %213 = vmatprep.subr.mxu0 0.0
    %214 = vmatpush2.msra.mxu0 0.0
    %215 = vmatprep.subr.mxu0 0.0
    %216 = vmatpush2.msra.mxu0 0.0
    %217 = vmatprep.subr.mxu0 0.0
    %218 = vmatpush2.msra.mxu0 0.0
    %219 = vmatprep.subr.mxu0 0.0
    %220 = vmatpush2.msra.mxu0 0.0
    %221 = vmatprep.subr.mxu0 0.0
    %222 = vmatpush2.msra.mxu0 0.0
    %223 = vmatprep.subr.mxu0 0.0
    %224 = vmatpush2.msra.mxu0 0.0
    %225 = vmatprep.subr.mxu0 0.0
    %226 = vmatpush2.msra.mxu0 0.0
    %227 = vmatprep.subr.mxu0 0.0
    %228 = vmatpush2.msra.mxu0 0.0
    %229 = vmatprep.subr.mxu0 0.0
    %230 = vmatpush2.msra.mxu0 0.0
    %231 = vmatprep.subr.mxu0 0.0
    %232 = vmatpush2.msra.mxu0 0.0
    %233 = vmatprep.subr.mxu0 0.0
    %234 = vmatpush2.msra.mxu0 0.0
    %235 = vmatprep.subr.mxu0 0.0
    %236 = vmatpush2.msra.mxu0 0.0
    %237 = vmatprep.subr.mxu0 0.0
    %238 = vmatpush2.msra.mxu0 0.0
    %239 = vmatprep.subr.mxu0 0.0
    %240 = vmatpush2.msra.mxu0 0.0
    %241 = vmatprep.subr.mxu0 0.0
    %242 = vmatpush2.msra.mxu0 0.0
    %243 = vmatprep.subr.mxu0 0.0
    %244 = vmatpush2.msra.mxu0 0.0
    %245 = vmatprep.mubr.f32.mxu0 0.0
    %246 = vmatmul.mubr.f32.gmra.mxu0 %v176
    %v247 = vpop.f32.mrf.mxu0
    %v248 = vadd.f32 %v172, %v247
    %v249 = vpop.f32.mrf.mxu0
    %250 = vmatprep.mubr.f32.mxu0 0.0
    %251 = vmatmul.mubr.f32.gmra.mxu0 %v179
    %v252 = vpop.f32.mrf.mxu0
    %v253 = vadd.f32 %v172, %v252
    %v254 = vpop.f32.mrf.mxu0
    %255 = vdwg.mxu0
    %v256 = vmul.f32 %v248, 0.5
    %v257 = vmul.f32 %v253, 0.5
    %v258 = vtanh.pop %v256
    %v259 = vtanh.pop %v257
    %v260 = vmul.f32 %v258, 0.5
    %v261 = vmul.f32 %v259, 0.5
    %v262 = vadd.f32 %v260, 0.5
    %v263 = vadd.f32 %v261, 0.5
    %264 = vst [vmem:[#allocation8] sm:$0xff] %v262
    %265 = vst [vmem:[#allocation8 + $0x8] sm:$0xff] %v263
    // Predicated region
    $region34: #{tpu_custom_call.1} parent=1 // pred_check
      _
    $region35: #{tpu_custom_call.1} parent=1 // pred_check_branch
      %267 = sbr.rel (0) target = $region37
    $region36: #{tpu_custom_call.1} parent=1 // pred_region
      %s269 = ssub.s32 256, 16
      %270 = vsyncadd [#allocation4], %s269
      %s271 = sshll.u32 [#allocation8], 4
      %s272 = int_to_ptr.vmem [resolvable:$true] %s271
      %277 = dma.vmem_to_hbm [thread:$0]  %s272, 16, %s5, [#allocation4], 16, 16, 1
    $region37: #{tpu_custom_call.1} parent=1 // pred_fallthru
      _
    // Predicated region
    $region38: #{tpu_custom_call.1} parent=1 // pred_check
      _
    $region39: #{tpu_custom_call.1} parent=1 // pred_check_branch
      %279 = sbr.rel (0) target = $region41
    $region40: #{tpu_custom_call.1} parent=1 // pred_region
      %280 = dma.done [#allocation4], 256
    $region41: #{tpu_custom_call.1} parent=1 // pred_fallthru
      _
    %281 = vsyncpa [#allocation3], 1
    %282 = vsyncpa [#allocation6], 1
    %283 = vsyncpa [#allocation4], 1

</llo_original>
